<compile_context>
chip_gen: v7x
topology: tpu7x:2x2x1
jax: 0.10.0
libtpu: 0.0.40
codegen_flags: <defaults>
</compile_context>

<pallas_src>
import jax
import jax.numpy as jnp
from jax.experimental import pallas as pl
from jax.experimental.pallas import tpu as pltpu

_LANE = 128
_MAX_TILE_ROWS = 4096             # up to 2 MiB f32 per P-tile buffer
_X_BLOCK_BUDGET_BYTES = 4 << 20   # per x/out block, per pipeline buffer
_VMEM_LIMIT_BYTES = 48 << 20      # double-buffered footprint << v7x's 64 MiB


def _build_pe_table(num_hiddens: int, max_len: int = 1000) -> jnp.ndarray:
    """Deterministic sin/cos positional table (mirrors the PyTorch __init__)."""
    pos = jnp.arange(max_len, dtype=jnp.float32).reshape(-1, 1)
    div = jnp.power(
        jnp.float32(10000.0),
        jnp.arange(0, num_hiddens, 2, dtype=jnp.float32) / num_hiddens,
    )
    angles = pos / div  # (max_len, H//2)
    p = jnp.zeros((1, max_len, num_hiddens), dtype=jnp.float32)
    p = p.at[:, :, 0::2].set(jnp.sin(angles)[None])
    p = p.at[:, :, 1::2].set(jnp.cos(angles)[None])
    return p


def _round_down(x: int, m: int) -> int:
    return (x // m) * m


def _round_up(x: int, m: int) -> int:
    return -(-x // m) * m


def _pe_add_kernel(x_ref, p_ref, o_ref):
    # x_ref/o_ref: (B_blk, TR, 128); p_ref: (TR, 128).
    # Broadcast over the folded batch dim happens inside the step (pure VPU).
    o_ref[...] = x_ref[...] + p_ref[...][None, :, :]


def positional_encoding_forward(
    x: jnp.ndarray,
    p_full: jnp.ndarray,
    *,
    max_tile_rows: int = _MAX_TILE_ROWS,
    x_block_budget_bytes: int = _X_BLOCK_BUDGET_BYTES,
    donate_x: bool = False,
) -> jnp.ndarray:
    """x: (B, L, H); p_full: (1, max_len, H). Returns x + p_full[:, :L, :].

    NOTE: when x is lower precision (e.g. bf16) the add is performed in x's
    dtype (P is cast once to x.dtype), which can differ in the low bits from
    PyTorch's f32-buffer promotion semantics.
    """
    b, seq_len, num_hiddens = x.shape
    one, max_len, table_h = p_full.shape
    assert one == 1 and table_h == num_hiddens, "table/hidden mismatch"
    assert seq_len <= max_len, "seq_len must not exceed the positional table length"

    n = seq_len * num_hiddens   # flattened (L, H) size per batch element
    m = max_len * num_hiddens   # flattened table size

    if n % _LANE != 0:
        # TODO(synk): lane-dense tiling needs L*H % 128 == 0; fall back to the
        # XLA elementwise add (already at HBM roofline) for odd hidden sizes.
        return x + p_full[:, :seq_len, :].astype(x.dtype)

    r = n // _LANE                               # 128-lane rows per batch elem
    itemsize = jnp.dtype(x.dtype).itemsize
    sub = max(8, 32 // itemsize)                 # dtype-aware sublane multiple
    row_bytes = _LANE * itemsize

    x3d = x.reshape(b, r, _LANE)                 # contiguous -> free reshape

    # ---- choose (B_blk, TR): fold the whole batch into one block if it fits.
    if r < sub:
        # Tiny problem: block row dim must equal the full array extent.
        b_blk, tr = b, r
    else:
        max_tr_full_batch = x_block_budget_bytes // (b * row_bytes)
        if max_tr_full_batch >= sub:
            b_blk = b
            tr = max(sub, _round_down(min(r, max_tile_rows, max_tr_full_batch), sub))
        else:
            # Batch too large to fold entirely: keep TR minimal, tile batch.
            tr = sub
            b_blk = min(b, max(1, x_block_budget_bytes // (tr * row_bytes)))

    num_row_tiles = pl.cdiv(r, tr)
    num_b_tiles = pl.cdiv(b, b_blk)

    # v7x megacore: keep >= 2 parallel grid steps when there is meaningful
    # work, so both TensorCores contribute (no-op on single-TC v5e/v6e).
    if num_row_tiles == 1 and num_b_tiles == 1:
        if r >= 2 * sub:
            tr = _round_up(pl.cdiv(r, 2), sub)
            num_row_tiles = pl.cdiv(r, tr)
        elif b >= 2 and r >= sub:
            b_blk = pl.cdiv(b, 2)
            num_b_tiles = pl.cdiv(b, b_blk)

    # ---- positional table, lane-dense view. Never re-cast the full table.
    if tr % 8 == 0 and m % _LANE == 0 and (m // _LANE) >= r:
        # Free reshape of the whole table; the index_map only touches the
        # first ceil(r / tr) blocks (any rows past r that the last block reads
        # are added into x rows that Pallas masks out of the output write).
        p2d = p_full.reshape(m // _LANE, _LANE)
        if p2d.dtype != x.dtype:
            # Cast only the used L*H prefix, not the full max_len table.
            p2d = p2d[:r].astype(x.dtype)
    else:
        # Tiny block (tr == r < 8) or non-lane-aligned table: materialize just
        # the n-element prefix so the P block shape equals its array shape.
        p2d = p_full.reshape(-1)[:n].reshape(r, _LANE).astype(x.dtype)

    extra = {}
    if donate_x:
        # Write the sum back into x's HBM buffer (no extra output allocation).
        extra["input_output_aliases"] = {0: 0}

    out3d = pl.pallas_call(
        _pe_add_kernel,
        out_shape=jax.ShapeDtypeStruct((b, r, _LANE), x.dtype),
        grid_spec=pltpu.PrefetchScalarGridSpec(
            num_scalar_prefetch=0,
            # Batch tiles innermost: the P block index repeats across them, so
            # Pallas skips re-issuing the P DMA (only matters when B is tiled).
            grid=(num_row_tiles, num_b_tiles),
            in_specs=[
                pl.BlockSpec((b_blk, tr, _LANE), lambda t, ib: (ib, t, 0)),
                pl.BlockSpec((tr, _LANE), lambda t, ib: (t, 0)),
            ],
            out_specs=pl.BlockSpec((b_blk, tr, _LANE), lambda t, ib: (ib, t, 0)),
        ),
        compiler_params=pltpu.CompilerParams(
            dimension_semantics=("parallel", "parallel"),
            vmem_limit_bytes=_VMEM_LIMIT_BYTES,
        ),
        cost_estimate=pl.CostEstimate(
            flops=b * n,
            transcendentals=0,
            bytes_accessed=(2 * b * n + n) * itemsize,
        ),
        **extra,
    )(x3d, p2d)

    return out3d.reshape(b, seq_len, num_hiddens)


def _check(batch, seq_len, num_hiddens, max_len, key,
           dtype=jnp.float32, atol=1e-6, **kwargs):
    p_full = _build_pe_table(num_hiddens, max_len)
    x = jax.random.normal(
        key, (batch, seq_len, num_hiddens), dtype=jnp.float32).astype(dtype)
    out = jax.block_until_ready(positional_encoding_forward(x, p_full, **kwargs))
    ref = (x.astype(jnp.float32) + p_full[:, :seq_len, :]).astype(dtype)
    assert out.shape == x.shape and out.dtype == x.dtype
    assert jnp.allclose(out.astype(jnp.float32), ref.astype(jnp.float32),
                        atol=atol), (
        f"mismatch vs reference for shape {(batch, seq_len, num_hiddens)} "
        f"dtype={dtype}")


if __name__ == "__main__":
    key = jax.random.PRNGKey(0)
    k0, k1, k2, k3, k4 = jax.random.split(key, 5)

    # Spec-consistent small shape (B=2, L=8, H=32): single tiny lane-dense tile.
    _check(batch=2, seq_len=8, num_hiddens=32, max_len=1000, key=k0)

    # Batch folded into one block + megacore row split (2 parallel steps).
    _check(batch=2, seq_len=64, num_hiddens=128, max_len=1000, key=k1)

    # Multi-row-tile path with a ragged last tile (small max_tile_rows forces it).
    _check(batch=2, seq_len=50, num_hiddens=128, max_len=1000, key=k2,
           max_tile_rows=16)

    # bf16 path: 16-row sublane granularity + prefix-only table cast.
    _check(batch=2, seq_len=64, num_hiddens=128, max_len=1000, key=k3,
           dtype=jnp.bfloat16, atol=6e-2)

    # Batch-tiled path (tiny budget forces B_blk < B, P DMA reused across batch).
    _check(batch=4, seq_len=64, num_hiddens=128, max_len=1000, key=k4,
           x_block_budget_bytes=8192)

    print("KERNEL_OK")
</pallas_src>

<mosaic_0001>
module attributes {stable_mosaic.version = 11 : i64} {
  func.func @_pe_add_kernel(%arg0: i32, %arg1: i32, %arg2: memref<2x2x128xf32, #tpu.memory_space<vmem>>, %arg3: memref<2x128xf32, #tpu.memory_space<vmem>>, %arg4: memref<2x2x128xf32, #tpu.memory_space<vmem>>) attributes {dimension_semantics = [#tpu.dimension_semantics<parallel>, #tpu.dimension_semantics<parallel>], iteration_bounds = array<i64: 1, 1>, scalar_prefetch = 0 : i64, scratch_operands = 0 : i64, tpu.core_type = #tpu.core_type<tc>, window_params = [{transform_indices = @transform_0, window_bounds = array<i64: 2, 2, 128>}, {transform_indices = @transform_1, window_bounds = array<i64: 2, 128>}, {transform_indices = @transform_2, window_bounds = array<i64: 2, 2, 128>}]} {
    %c0 = arith.constant 0 : index
    %c0_0 = arith.constant 0 : index
    %c0_1 = arith.constant 0 : index
    %0 = vector.load %arg2[%c0, %c0_0, %c0_1] : memref<2x2x128xf32, #tpu.memory_space<vmem>>, vector<2x2x128xf32>
    %c0_2 = arith.constant 0 : index
    %c0_3 = arith.constant 0 : index
    %1 = vector.load %arg3[%c0_2, %c0_3] : memref<2x128xf32, #tpu.memory_space<vmem>>, vector<2x128xf32>
    %2 = vector.shape_cast %1 : vector<2x128xf32> to vector<1x2x128xf32>
    %3 = vector.broadcast %2 : vector<1x2x128xf32> to vector<2x2x128xf32>
    %4 = arith.addf %0, %3 : vector<2x2x128xf32>
    %c0_4 = arith.constant 0 : index
    %c0_5 = arith.constant 0 : index
    %c0_6 = arith.constant 0 : index
    %5 = vector.load %arg4[%c0_4, %c0_5, %c0_6] : memref<2x2x128xf32, #tpu.memory_space<vmem>>, vector<2x2x128xf32>
    tpu.vector_store %arg4[%c0_4, %c0_5, %c0_6], %4 {strides = array<i32>} : memref<2x2x128xf32, #tpu.memory_space<vmem>>, vector<2x2x128xf32>,
    return
  }
  func.func @transform_0(%arg0: i32, %arg1: i32) -> (i32, i32, i32) {
    %c0_i32 = arith.constant 0 : i32
    %c0_i32_0 = arith.constant 0 : i32
    return %arg1, %arg0, %c0_i32 : i32, i32, i32
  }
  func.func @transform_1(%arg0: i32, %arg1: i32) -> (i32, i32) {
    %c0_i32 = arith.constant 0 : i32
    %c0_i32_0 = arith.constant 0 : i32
    return %arg0, %c0_i32 : i32, i32
  }
  func.func @transform_2(%arg0: i32, %arg1: i32) -> (i32, i32, i32) {
    %c0_i32 = arith.constant 0 : i32
    %c0_i32_0 = arith.constant 0 : i32
    return %arg1, %arg0, %c0_i32 : i32, i32, i32
  }
}

</mosaic_0001>

<llo_original>
// kernel: tpu_custom_call.1
$region0: #{tpu_custom_call.1}
  #allocation0 [shape = 'u32[]', space=smem, size = 0x4, offset = 0x4, fixed_abs, tag = 'smem constant byte address 0x4 - core index']
  #allocation1 [shape = 'u32[144,128]{1,0:T(1,128)}', space=vmem, size = 0x12000, scoped, tag = 'internal scratch']
  %s0 = inlined_call_operand.hbm [shape: f32[2,2,128], index: 0, kind: input, shape index: {}]
  %s1 = inlined_call_operand.vmem [shape: f32[2,128], index: 1, kind: input, shape index: {}]
  %s2 = inlined_call_operand.hbm [shape: f32[2,2,128], index: 2, kind: output, shape index: {}]
  %s3 = sld [smem:[#allocation0]]
  $region22: #{tpu_custom_call.1} parent=0
    _
  %s5 = ssub.s32 1, %s3
  %s6 = scalar_select 0, %s5, %s3
  $region1: #{tpu_custom_call.1} parent=0
    #allocation2 [shape = 'u8[2048]{0}', space=vmem, size = 0x800, scoped, tag = 'input window, operand 0, single buffered']
    #allocation3 [shape = 's32[1]{0}', space=sflag, size = 0x4, scoped, tag = 'scoped memory for tpu_custom_call.1']
    #allocation4 [shape = 's32[1]{0}', space=sflag, size = 0x4, scoped, tag = 'scoped memory for tpu_custom_call.1']
    #allocation5 [shape = 'u8[2048]{0}', space=vmem, size = 0x800, scoped, tag = 'output window, operand 0, single buffered']
    %7 = vsyncpa [#allocation3], 0
    %8 = vsyncpa [#allocation4], 0
    // Predicated region
    $region2: #{tpu_custom_call.1} parent=1 // pred_check
      _
    $region3: #{tpu_custom_call.1} parent=1 // pred_check_branch
      %10 = sbr.rel (0) target = $region5
    $region4: #{tpu_custom_call.1} parent=1 // pred_region
      %s12 = ssub.s32 64, 64
      %13 = vsyncadd [#allocation3], %s12
      %s14 = sshll.u32 [#allocation2], 4
      %s15 = int_to_ptr.vmem [resolvable:$true] %s14
      %20 = dma.hbm_to_vmem [thread:$0]  %s0, 64, %s15, [#allocation3], 32, 32, 2
    $region5: #{tpu_custom_call.1} parent=1 // pred_fallthru
      _
    // Predicated region
    $region6: #{tpu_custom_call.1} parent=1 // pred_check
      _
    $region7: #{tpu_custom_call.1} parent=1 // pred_check_branch
      %22 = sbr.rel (0) target = $region9
    $region8: #{tpu_custom_call.1} parent=1 // pred_region
      _
    $region9: #{tpu_custom_call.1} parent=1 // pred_fallthru
      _
    // Predicated region
    $region10: #{tpu_custom_call.1} parent=1 // pred_check
      _
    $region11: #{tpu_custom_call.1} parent=1 // pred_check_branch
      %24 = sbr.rel (0) target = $region13
    $region12: #{tpu_custom_call.1} parent=1 // pred_region
      %25 = dma.done [#allocation3], 64
    $region13: #{tpu_custom_call.1} parent=1 // pred_fallthru
      _
    %v26 = vld [vmem:[#allocation2] sm:$0x3]
    %v27 = vld [vmem:[#allocation2 + $0x2] sm:$0x3]
    %v28 = vld [vmem:[%s1] sm:$0x3]
    %v29 = vadd.f32 %v26, %v28
    %v30 = vadd.f32 %v27, %v28
    %31 = vst [vmem:[#allocation5] sm:$0x3] %v29
    %32 = vst [vmem:[#allocation5 + $0x2] sm:$0x3] %v30
    // Predicated region
    $region14: #{tpu_custom_call.1} parent=1 // pred_check
      _
    $region15: #{tpu_custom_call.1} parent=1 // pred_check_branch
      %34 = sbr.rel (0) target = $region17
    $region16: #{tpu_custom_call.1} parent=1 // pred_region
      %s36 = ssub.s32 64, 64
      %37 = vsyncadd [#allocation4], %s36
      %s38 = sshll.u32 [#allocation5], 4
      %s39 = int_to_ptr.vmem [resolvable:$true] %s38
      %44 = dma.vmem_to_hbm [thread:$0]  %s39, 64, %s2, [#allocation4], 32, 32, 2
    $region17: #{tpu_custom_call.1} parent=1 // pred_fallthru
      _
    // Predicated region
    $region18: #{tpu_custom_call.1} parent=1 // pred_check
      _
    $region19: #{tpu_custom_call.1} parent=1 // pred_check_branch
      %46 = sbr.rel (0) target = $region21
    $region20: #{tpu_custom_call.1} parent=1 // pred_region
      %47 = dma.done [#allocation4], 64
    $region21: #{tpu_custom_call.1} parent=1 // pred_fallthru
      _
    %48 = vsyncpa [#allocation3], 1
    %49 = vsyncpa [#allocation4], 1

</llo_original>
